<compile_context>
chip_gen: v7x
topology: tpu7x:2x2x1
jax: 0.10.0
libtpu: 0.0.40
codegen_flags: <defaults>
</compile_context>

<pallas_src>
import functools

import numpy as np
import jax
import jax.numpy as jnp
from jax.experimental import pallas as pl
from jax.experimental.pallas import tpu as pltpu


def _round_up(x, m):
    return ((x + m - 1) // m) * m


def trend_kernel(z_ref, w1_ref, b1_ref, w2_ref, b2_ref, basis_ref, out_ref,
                 *, feat_dim, trend_poly):
    # dense1 + ReLU (MXU).
    z = z_ref[...]                                                     # (TB, L)
    h1 = jnp.dot(z, w1_ref[...], preferred_element_type=jnp.float32) + b1_ref[...]
    h1 = jnp.maximum(h1, 0.0)                                          # (TB, FPp)

    # dense2 (MXU).  Columns are pre-permuted p-major, so
    #   h2[:, p*F + f] == trend_params[b, f, p].
    h2 = jnp.dot(h1, w2_ref[...], preferred_element_type=jnp.float32) + b2_ref[...]

    # Polynomial trend:  out[b, s, f] = sum_p trend_params[b, f, p] * (s/S)^(p+1)
    # Done as `trend_poly` broadcast FMAs on the VPU against the tiny resident
    # basis (P, S, F).  No block-diagonal matmul, no big basis matrix, and the
    # (f, s) -> (s, f) output permutation is already baked into the layout.
    basis = basis_ref[...]                                             # (P, S, F)
    acc = jnp.zeros(out_ref.shape, jnp.float32)                        # (TB, S, F)
    for p in range(trend_poly):
        h2_p = h2[:, p * feat_dim:(p + 1) * feat_dim]                  # (TB, F)
        acc = acc + h2_p[:, None, :] * basis[p]                        # (TB,1,F)*(S,F)
    out_ref[...] = acc


def trend_layer_forward(z, w1, b1, w2, b2, seq_len, feat_dim, trend_poly):
    """w1: (latent, F*P), b1: (F*P,), w2: (F*P, F*P), b2: (F*P,) in (in, out) layout
    (i.e. transposed nn.Linear weights).  Returns (B, seq_len, feat_dim)."""
    B, latent_dim = z.shape
    FP = feat_dim * trend_poly
    FPp = _round_up(FP, 128)          # lane-dense hidden width (matmul N % 128 == 0)

    # Permute dense2's output columns to p-major order so the kernel can take
    # contiguous lane slices:  h2[:, p*F + f] == trend_params[:, f, p].
    perm = jnp.arange(FP).reshape(feat_dim, trend_poly).T.reshape(-1)
    w2p = jnp.take(w2.astype(jnp.float32), perm, axis=1)
    b2p = jnp.take(b2.astype(jnp.float32), perm, axis=0)

    # Zero-pad the hidden width to FPp lanes (padded cols of h1 are relu(0)=0 and
    # padded rows/cols of w2 are 0, so results are unchanged).
    pad = FPp - FP
    w1p = jnp.pad(w1.astype(jnp.float32), ((0, 0), (0, pad)))
    b1p = jnp.pad(b1.astype(jnp.float32), ((0, pad),)).reshape(1, FPp)
    w2pp = jnp.pad(w2p, ((0, pad), (0, pad)))
    b2pp = jnp.pad(b2p, ((0, pad),)).reshape(1, FPp)

    # Tiny polynomial basis, pre-broadcast over the feature lane:
    #   basis[p, s, f] = (s / seq_len) ** (p + 1)
    lin = jnp.arange(seq_len, dtype=jnp.float32) / seq_len
    poly = jnp.stack([lin ** float(p + 1) for p in range(trend_poly)], axis=0)  # (P, S)
    basis = jnp.broadcast_to(poly[:, :, None], (trend_poly, seq_len, feat_dim))
    basis = jnp.asarray(basis, jnp.float32)

    # Batch tiling: Pallas double-buffers the z/out tiles across grid steps and
    # the weights stay resident (constant index_map).  For very large seq_len *
    # feat_dim, shrink tile_b or raise vmem_limit_bytes.
    tile_b = B if B <= 128 else 128
    grid = (pl.cdiv(B, tile_b),)

    flops = 2 * B * (latent_dim * FP + FP * FP) + 2 * B * seq_len * feat_dim * trend_poly
    bytes_accessed = 4 * (B * latent_dim + latent_dim * FPp + FPp * FPp + 2 * FPp
                          + trend_poly * seq_len * feat_dim
                          + B * seq_len * feat_dim)

    kernel = functools.partial(trend_kernel, feat_dim=feat_dim, trend_poly=trend_poly)

    out = pl.pallas_call(
        kernel,
        out_shape=jax.ShapeDtypeStruct((B, seq_len, feat_dim), jnp.float32),
        grid=grid,
        in_specs=[
            pl.BlockSpec((tile_b, latent_dim), lambda i: (i, 0)),               # z (tiled)
            pl.BlockSpec((latent_dim, FPp), lambda i: (0, 0)),                  # w1 (resident)
            pl.BlockSpec((1, FPp), lambda i: (0, 0)),                           # b1
            pl.BlockSpec((FPp, FPp), lambda i: (0, 0)),                         # w2 (permuted)
            pl.BlockSpec((1, FPp), lambda i: (0, 0)),                           # b2 (permuted)
            pl.BlockSpec((trend_poly, seq_len, feat_dim), lambda i: (0, 0, 0)), # basis
        ],
        out_specs=pl.BlockSpec((tile_b, seq_len, feat_dim), lambda i: (i, 0, 0)),
        compiler_params=pltpu.CompilerParams(dimension_semantics=("parallel",)),
        cost_estimate=pl.CostEstimate(flops=flops, transcendentals=0,
                                      bytes_accessed=bytes_accessed),
    )(z.astype(jnp.float32), w1p, b1p, w2pp, b2pp, basis)

    # Output is already (B, seq_len, feat_dim): the permute(0, 2, 1) of the
    # PyTorch module is baked into the basis layout.  No glue ops needed.
    return out


def reference_forward(z, w1, b1, w2, b2, seq_len, feat_dim, trend_poly):
    h1 = jax.nn.relu(z @ w1 + b1)
    h2 = h1 @ w2 + b2
    tp = h2.reshape(-1, feat_dim, trend_poly)
    lin_space = jnp.arange(0, float(seq_len), 1.0, dtype=jnp.float32) / seq_len
    poly_space = jnp.stack([lin_space ** float(p + 1) for p in range(trend_poly)], axis=0)
    tv = jnp.einsum("bfp,ps->bfs", tp, poly_space)
    return tv.transpose(0, 2, 1)


if __name__ == "__main__":
    # Small shapes consistent with the module.
    B, seq_len, feat_dim, latent_dim, trend_poly = 2, 8, 4, 8, 3
    FP = feat_dim * trend_poly

    key = jax.random.PRNGKey(0)
    k_z, k_w1, k_b1, k_w2, k_b2 = jax.random.split(key, 5)

    z = jax.random.normal(k_z, (B, latent_dim), dtype=jnp.float32)
    # nn.Linear weights stored transposed as (in, out) for the kernel.
    w1 = jax.random.normal(k_w1, (latent_dim, FP), dtype=jnp.float32) * 0.1
    b1 = jax.random.normal(k_b1, (FP,), dtype=jnp.float32) * 0.1
    w2 = jax.random.normal(k_w2, (FP, FP), dtype=jnp.float32) * 0.1
    b2 = jax.random.normal(k_b2, (FP,), dtype=jnp.float32) * 0.1

    out = trend_layer_forward(z, w1, b1, w2, b2, seq_len, feat_dim, trend_poly)
    out = jax.block_until_ready(out)

    ref = reference_forward(z, w1, b1, w2, b2, seq_len, feat_dim, trend_poly)
    assert out.shape == (B, seq_len, feat_dim)
    np.testing.assert_allclose(np.asarray(out), np.asarray(ref), rtol=1e-5, atol=1e-5)

    print("KERNEL_OK")
</pallas_src>

<mosaic_0001>
module attributes {stable_mosaic.version = 11 : i64} {
  func.func @trend_kernel(%arg0: i32, %arg1: memref<2x8xf32, #tpu.memory_space<vmem>>, %arg2: memref<8x128xf32, #tpu.memory_space<vmem>>, %arg3: memref<1x128xf32, #tpu.memory_space<vmem>>, %arg4: memref<128x128xf32, #tpu.memory_space<vmem>>, %arg5: memref<1x128xf32, #tpu.memory_space<vmem>>, %arg6: memref<3x8x4xf32, #tpu.memory_space<vmem>>, %arg7: memref<2x8x4xf32, #tpu.memory_space<vmem>>) attributes {dimension_semantics = [#tpu.dimension_semantics<parallel>], iteration_bounds = array<i64: 1>, scalar_prefetch = 0 : i64, scratch_operands = 0 : i64, tpu.core_type = #tpu.core_type<tc>, window_params = [{transform_indices = @transform_0, window_bounds = array<i64: 2, 8>}, {pipeline_mode = #tpu.pipeline_mode<synchronous>, transform_indices = @transform_1, window_bounds = array<i64: 8, 128>}, {pipeline_mode = #tpu.pipeline_mode<synchronous>, transform_indices = @transform_2, window_bounds = array<i64: 1, 128>}, {pipeline_mode = #tpu.pipeline_mode<synchronous>, transform_indices = @transform_3, window_bounds = array<i64: 128, 128>}, {pipeline_mode = #tpu.pipeline_mode<synchronous>, transform_indices = @transform_4, window_bounds = array<i64: 1, 128>}, {pipeline_mode = #tpu.pipeline_mode<synchronous>, transform_indices = @transform_5, window_bounds = array<i64: 3, 8, 4>}, {transform_indices = @transform_6, window_bounds = array<i64: 2, 8, 4>}]} {
    %c0 = arith.constant 0 : index
    %c0_0 = arith.constant 0 : index
    %0 = vector.load %arg1[%c0, %c0_0] : memref<2x8xf32, #tpu.memory_space<vmem>>, vector<2x8xf32>
    %c0_1 = arith.constant 0 : index
    %c0_2 = arith.constant 0 : index
    %1 = vector.load %arg2[%c0_1, %c0_2] : memref<8x128xf32, #tpu.memory_space<vmem>>, vector<8x128xf32>
    %cst = arith.constant dense<0.000000e+00> : vector<2x128xf32>
    %2 = tpu.matmul %0, %1, %cst {dimension_numbers = #tpu.dot_dimension_numbers<[1], [0], [0], [1], [0, 0, 1, 1], [], []>} : vector<2x8xf32>, vector<8x128xf32>, vector<2x128xf32> -> vector<2x128xf32>
    %c0_3 = arith.constant 0 : index
    %c0_4 = arith.constant 0 : index
    %3 = vector.load %arg3[%c0_3, %c0_4] : memref<1x128xf32, #tpu.memory_space<vmem>>, vector<1x128xf32>
    %4 = vector.broadcast %3 : vector<1x128xf32> to vector<2x128xf32>
    %5 = arith.addf %2, %4 : vector<2x128xf32>
    %cst_5 = arith.constant 0.000000e+00 : f32
    %6 = vector.broadcast %cst_5 : f32 to vector<2x128xf32>
    %7 = arith.maximumf %5, %6 : vector<2x128xf32>
    %c0_6 = arith.constant 0 : index
    %c0_7 = arith.constant 0 : index
    %8 = vector.load %arg4[%c0_6, %c0_7] : memref<128x128xf32, #tpu.memory_space<vmem>>, vector<128x128xf32>
    %cst_8 = arith.constant dense<0.000000e+00> : vector<2x128xf32>
    %9 = tpu.matmul %7, %8, %cst_8 {dimension_numbers = #tpu.dot_dimension_numbers<[1], [0], [0], [1], [0, 0, 1, 1], [], []>} : vector<2x128xf32>, vector<128x128xf32>, vector<2x128xf32> -> vector<2x128xf32>
    %c0_9 = arith.constant 0 : index
    %c0_10 = arith.constant 0 : index
    %10 = vector.load %arg5[%c0_9, %c0_10] : memref<1x128xf32, #tpu.memory_space<vmem>>, vector<1x128xf32>
    %11 = vector.broadcast %10 : vector<1x128xf32> to vector<2x128xf32>
    %12 = arith.addf %9, %11 : vector<2x128xf32>
    %c0_11 = arith.constant 0 : index
    %c0_12 = arith.constant 0 : index
    %c0_13 = arith.constant 0 : index
    %13 = vector.load %arg6[%c0_11, %c0_12, %c0_13] : memref<3x8x4xf32, #tpu.memory_space<vmem>>, vector<3x8x4xf32>
    %cst_14 = arith.constant 0.000000e+00 : f32
    %14 = vector.broadcast %cst_14 : f32 to vector<2x8x4xf32>
    %15 = vector.extract_strided_slice %12 {offsets = [0, 0], sizes = [2, 4], strides = [1, 1]} : vector<2x128xf32> to vector<2x4xf32>
    %16 = vector.shape_cast %15 : vector<2x4xf32> to vector<2x1x4xf32>
    %17 = vector.extract_strided_slice %13 {offsets = [0, 0, 0], sizes = [1, 8, 4], strides = [1, 1, 1]} : vector<3x8x4xf32> to vector<1x8x4xf32>
    %18 = vector.shape_cast %17 : vector<1x8x4xf32> to vector<8x4xf32>
    %19 = vector.shape_cast %18 : vector<8x4xf32> to vector<1x8x4xf32>
    %20 = vector.broadcast %16 : vector<2x1x4xf32> to vector<2x8x4xf32>
    %21 = vector.broadcast %19 : vector<1x8x4xf32> to vector<2x8x4xf32>
    %22 = arith.mulf %20, %21 : vector<2x8x4xf32>
    %23 = arith.addf %14, %22 : vector<2x8x4xf32>
    %24 = vector.extract_strided_slice %12 {offsets = [0, 4], sizes = [2, 4], strides = [1, 1]} : vector<2x128xf32> to vector<2x4xf32>
    %25 = vector.shape_cast %24 : vector<2x4xf32> to vector<2x1x4xf32>
    %26 = vector.extract_strided_slice %13 {offsets = [1, 0, 0], sizes = [1, 8, 4], strides = [1, 1, 1]} : vector<3x8x4xf32> to vector<1x8x4xf32>
    %27 = vector.shape_cast %26 : vector<1x8x4xf32> to vector<8x4xf32>
    %28 = vector.shape_cast %27 : vector<8x4xf32> to vector<1x8x4xf32>
    %29 = vector.broadcast %25 : vector<2x1x4xf32> to vector<2x8x4xf32>
    %30 = vector.broadcast %28 : vector<1x8x4xf32> to vector<2x8x4xf32>
    %31 = arith.mulf %29, %30 : vector<2x8x4xf32>
    %32 = arith.addf %23, %31 : vector<2x8x4xf32>
    %33 = vector.extract_strided_slice %12 {offsets = [0, 8], sizes = [2, 4], strides = [1, 1]} : vector<2x128xf32> to vector<2x4xf32>
    %34 = vector.shape_cast %33 : vector<2x4xf32> to vector<2x1x4xf32>
    %35 = vector.extract_strided_slice %13 {offsets = [2, 0, 0], sizes = [1, 8, 4], strides = [1, 1, 1]} : vector<3x8x4xf32> to vector<1x8x4xf32>
    %36 = vector.shape_cast %35 : vector<1x8x4xf32> to vector<8x4xf32>
    %37 = vector.shape_cast %36 : vector<8x4xf32> to vector<1x8x4xf32>
    %38 = vector.broadcast %34 : vector<2x1x4xf32> to vector<2x8x4xf32>
    %39 = vector.broadcast %37 : vector<1x8x4xf32> to vector<2x8x4xf32>
    %40 = arith.mulf %38, %39 : vector<2x8x4xf32>
    %41 = arith.addf %32, %40 : vector<2x8x4xf32>
    %c0_15 = arith.constant 0 : index
    %c0_16 = arith.constant 0 : index
    %c0_17 = arith.constant 0 : index
    %42 = vector.load %arg7[%c0_15, %c0_16, %c0_17] : memref<2x8x4xf32, #tpu.memory_space<vmem>>, vector<2x8x4xf32>
    tpu.vector_store %arg7[%c0_15, %c0_16, %c0_17], %41 {strides = array<i32>} : memref<2x8x4xf32, #tpu.memory_space<vmem>>, vector<2x8x4xf32>,
    return
  }
  func.func @transform_0(%arg0: i32) -> (i32, i32) {
    %c0_i32 = arith.constant 0 : i32
    %c0_i32_0 = arith.constant 0 : i32
    return %arg0, %c0_i32 : i32, i32
  }
  func.func @transform_1(%arg0: i32) -> (i32, i32) {
    %c0_i32 = arith.constant 0 : i32
    %c0_i32_0 = arith.constant 0 : i32
    %c0_i32_1 = arith.constant 0 : i32
    return %c0_i32, %c0_i32_0 : i32, i32
  }
  func.func @transform_2(%arg0: i32) -> (i32, i32) {
    %c0_i32 = arith.constant 0 : i32
    %c0_i32_0 = arith.constant 0 : i32
    %c0_i32_1 = arith.constant 0 : i32
    return %c0_i32, %c0_i32_0 : i32, i32
  }
  func.func @transform_3(%arg0: i32) -> (i32, i32) {
    %c0_i32 = arith.constant 0 : i32
    %c0_i32_0 = arith.constant 0 : i32
    %c0_i32_1 = arith.constant 0 : i32
    return %c0_i32, %c0_i32_0 : i32, i32
  }
  func.func @transform_4(%arg0: i32) -> (i32, i32) {
    %c0_i32 = arith.constant 0 : i32
    %c0_i32_0 = arith.constant 0 : i32
    %c0_i32_1 = arith.constant 0 : i32
    return %c0_i32, %c0_i32_0 : i32, i32
  }
  func.func @transform_5(%arg0: i32) -> (i32, i32, i32) {
    %c0_i32 = arith.constant 0 : i32
    %c0_i32_0 = arith.constant 0 : i32
    %c0_i32_1 = arith.constant 0 : i32
    %c0_i32_2 = arith.constant 0 : i32
    return %c0_i32, %c0_i32_0, %c0_i32_1 : i32, i32, i32
  }
  func.func @transform_6(%arg0: i32) -> (i32, i32, i32) {
    %c0_i32 = arith.constant 0 : i32
    %c0_i32_0 = arith.constant 0 : i32
    %c0_i32_1 = arith.constant 0 : i32
    return %arg0, %c0_i32, %c0_i32_0 : i32, i32, i32
  }
}

</mosaic_0001>

<llo_original>
// kernel: tpu_custom_call.1
$region0: #{tpu_custom_call.1}
  #allocation0 [shape = 'u32[]', space=smem, size = 0x4, offset = 0x4, fixed_abs, tag = 'smem constant byte address 0x4 - core index']
  #allocation1 [shape = 'u32[144,128]{1,0:T(1,128)}', space=vmem, size = 0x12000, scoped, tag = 'internal scratch']
  %s0 = inlined_call_operand.vmem [shape: f32[2,8], index: 0, kind: input, shape index: {}]
  %s1 = inlined_call_operand.vmem [shape: f32[8,128], index: 1, kind: input, shape index: {}]
  %s2 = inlined_call_operand.vmem [shape: f32[1,128], index: 2, kind: input, shape index: {}]
  %s3 = inlined_call_operand.hbm [shape: f32[128,128], index: 3, kind: input, shape index: {}]
  %s4 = inlined_call_operand.vmem [shape: f32[1,128], index: 4, kind: input, shape index: {}]
  %s5 = inlined_call_operand.vmem [shape: f32[3,8,4], index: 5, kind: input, shape index: {}]
  %s6 = inlined_call_operand.vmem [shape: f32[2,8,4], index: 6, kind: output, shape index: {}]
  %s7 = sld [smem:[#allocation0]]
  $region38: #{tpu_custom_call.1} parent=0
    _
  %s9 = ssub.s32 1, %s7
  %s10 = scalar_select 0, %s9, %s7
  $region1: #{tpu_custom_call.1} parent=0
    #allocation2 [shape = 'u8[65536]{0}', space=vmem, size = 0x10000, scoped, tag = 'input window, operand 3, single buffered']
    #allocation3 [shape = 's32[1]{0}', space=sflag, size = 0x4, scoped, tag = 'scoped memory for tpu_custom_call.1']
    %11 = vsyncpa [#allocation3], 0
    // Predicated region
    $region2: #{tpu_custom_call.1} parent=1 // pred_check
      _
    $region3: #{tpu_custom_call.1} parent=1 // pred_check_branch
      %13 = sbr.rel (0) target = $region5
    $region4: #{tpu_custom_call.1} parent=1 // pred_region
      _
    $region5: #{tpu_custom_call.1} parent=1 // pred_fallthru
      _
    // Predicated region
    $region6: #{tpu_custom_call.1} parent=1 // pred_check
      _
    $region7: #{tpu_custom_call.1} parent=1 // pred_check_branch
      %15 = sbr.rel (0) target = $region9
    $region8: #{tpu_custom_call.1} parent=1 // pred_region
      _
    $region9: #{tpu_custom_call.1} parent=1 // pred_fallthru
      _
    // Predicated region
    $region10: #{tpu_custom_call.1} parent=1 // pred_check
      _
    $region11: #{tpu_custom_call.1} parent=1 // pred_check_branch
      %17 = sbr.rel (0) target = $region13
    $region12: #{tpu_custom_call.1} parent=1 // pred_region
      _
    $region13: #{tpu_custom_call.1} parent=1 // pred_fallthru
      _
    // Predicated region
    $region14: #{tpu_custom_call.1} parent=1 // pred_check
      _
    $region15: #{tpu_custom_call.1} parent=1 // pred_check_branch
      %19 = sbr.rel (0) target = $region17
    $region16: #{tpu_custom_call.1} parent=1 // pred_region
      %s21 = ssub.s32 2048, 2048
      %22 = vsyncadd [#allocation3], %s21
      %s23 = sshll.u32 [#allocation2], 4
      %s24 = int_to_ptr.vmem [resolvable:$true] %s23
      %29 = dma.hbm_to_vmem [thread:$0]  %s3, 2048, %s24, [#allocation3], 128, 128, 8
    $region17: #{tpu_custom_call.1} parent=1 // pred_fallthru
      _
    // Predicated region
    $region18: #{tpu_custom_call.1} parent=1 // pred_check
      _
    $region19: #{tpu_custom_call.1} parent=1 // pred_check_branch
      %31 = sbr.rel (0) target = $region21
    $region20: #{tpu_custom_call.1} parent=1 // pred_region
      _
    $region21: #{tpu_custom_call.1} parent=1 // pred_fallthru
      _
    // Predicated region
    $region22: #{tpu_custom_call.1} parent=1 // pred_check
      _
    $region23: #{tpu_custom_call.1} parent=1 // pred_check_branch
      %33 = sbr.rel (0) target = $region25
    $region24: #{tpu_custom_call.1} parent=1 // pred_region
      _
    $region25: #{tpu_custom_call.1} parent=1 // pred_fallthru
      _
    // Predicated region
    $region26: #{tpu_custom_call.1} parent=1 // pred_check
      _
    $region27: #{tpu_custom_call.1} parent=1 // pred_check_branch
      %35 = sbr.rel (0) target = $region29
    $region28: #{tpu_custom_call.1} parent=1 // pred_region
      %36 = dma.done [#allocation3], 2048
    $region29: #{tpu_custom_call.1} parent=1 // pred_fallthru
      _
    %v37 = vld [vmem:[%s0] sm:$0x3]
    %v38 = vld [vmem:[%s1] sm:$0xff]
    %v39 = vld [vmem:[%s2] sm:$0x1]
    %v41 = vlaneseq
    %v42 = vshrl.u32 %v41, 7
    %v43 = vsub.s32 0, %v42
    %v44 = vrot.slane %v39, %v43
    %vm46 = vcmask 64512
    %v48 = vsel %vm46, %v37, 0
    %50 = vmatprep.subr.mxu0 0.0
    %51 = vmatpush1.msra.mxu0 %v38
    %52 = vmatprep.subr.mxu0 0.0
    %53 = vmatpush1.msra.mxu0 0.0
    %54 = vmatprep.subr.mxu0 0.0
    %55 = vmatpush1.msra.mxu0 0.0
    %56 = vmatprep.subr.mxu0 0.0
    %57 = vmatpush1.msra.mxu0 0.0
    %58 = vmatprep.subr.mxu0 0.0
    %59 = vmatpush1.msra.mxu0 0.0
    %60 = vmatprep.subr.mxu0 0.0
    %61 = vmatpush1.msra.mxu0 0.0
    %62 = vmatprep.subr.mxu0 0.0
    %63 = vmatpush1.msra.mxu0 0.0
    %64 = vmatprep.subr.mxu0 0.0
    %65 = vmatpush1.msra.mxu0 0.0
    %66 = vmatprep.subr.mxu0 0.0
    %67 = vmatpush1.msra.mxu0 0.0
    %68 = vmatprep.subr.mxu0 0.0
    %69 = vmatpush1.msra.mxu0 0.0
    %70 = vmatprep.subr.mxu0 0.0
    %71 = vmatpush1.msra.mxu0 0.0
    %72 = vmatprep.subr.mxu0 0.0
    %73 = vmatpush1.msra.mxu0 0.0
    %74 = vmatprep.subr.mxu0 0.0
    %75 = vmatpush1.msra.mxu0 0.0
    %76 = vmatprep.subr.mxu0 0.0
    %77 = vmatpush1.msra.mxu0 0.0
    %78 = vmatprep.subr.mxu0 0.0
    %79 = vmatpush1.msra.mxu0 0.0
    %80 = vmatprep.subr.mxu0 0.0
    %81 = vmatpush1.msra.mxu0 0.0
    %82 = vmatprep.subr.mxu0 0.0
    %83 = vmatpush1.msra.mxu0 0.0
    %84 = vmatprep.subr.mxu0 0.0
    %85 = vmatpush1.msra.mxu0 0.0
    %86 = vmatprep.subr.mxu0 0.0
    %87 = vmatpush1.msra.mxu0 0.0
    %88 = vmatprep.subr.mxu0 0.0
    %89 = vmatpush1.msra.mxu0 0.0
    %90 = vmatprep.subr.mxu0 0.0
    %91 = vmatpush1.msra.mxu0 0.0
    %92 = vmatprep.subr.mxu0 0.0
    %93 = vmatpush1.msra.mxu0 0.0
    %94 = vmatprep.subr.mxu0 0.0
    %95 = vmatpush1.msra.mxu0 0.0
    %96 = vmatprep.subr.mxu0 0.0
    %97 = vmatpush1.msra.mxu0 0.0
    %98 = vmatprep.subr.mxu0 0.0
    %99 = vmatpush1.msra.mxu0 0.0
    %100 = vmatprep.subr.mxu0 0.0
    %101 = vmatpush1.msra.mxu0 0.0
    %102 = vmatprep.subr.mxu0 0.0
    %103 = vmatpush1.msra.mxu0 0.0
    %104 = vmatprep.subr.mxu0 0.0
    %105 = vmatpush1.msra.mxu0 0.0
    %106 = vmatprep.subr.mxu0 0.0
    %107 = vmatpush1.msra.mxu0 0.0
    %108 = vmatprep.subr.mxu0 0.0
    %109 = vmatpush1.msra.mxu0 0.0
    %110 = vmatprep.subr.mxu0 0.0
    %111 = vmatpush1.msra.mxu0 0.0
    %112 = vmatprep.subr.mxu0 0.0
    %113 = vmatpush1.msra.mxu0 0.0
    %114 = vmatprep.mubr.f32.mxu0 0.0
    %115 = vmatmul.mubr.f32.gmra.mrb[0].mxu0 %v48
    %v116 = vpop.f32.mrb[0].mxu0
    %v117 = vadd.f32 %v44, %v116
    %v118 = vpop.f32.mrb[0].mxu0
    %119 = vdwg.mxu0
    %v120 = vmax.f32 %v117, 0.0
    %v121 = vld [vmem:[#allocation2] sm:$0xff]
    %v122 = vld [vmem:[#allocation2 + $0x8] sm:$0xff]
    %v123 = vld [vmem:[#allocation2 + $0x10] sm:$0xff]
    %v124 = vld [vmem:[#allocation2 + $0x18] sm:$0xff]
    %v125 = vld [vmem:[#allocation2 + $0x20] sm:$0xff]
    %v126 = vld [vmem:[#allocation2 + $0x28] sm:$0xff]
    %v127 = vld [vmem:[#allocation2 + $0x30] sm:$0xff]
    %v128 = vld [vmem:[#allocation2 + $0x38] sm:$0xff]
    %v129 = vld [vmem:[#allocation2 + $0x40] sm:$0xff]
    %v130 = vld [vmem:[#allocation2 + $0x48] sm:$0xff]
    %v131 = vld [vmem:[#allocation2 + $0x50] sm:$0xff]
    %v132 = vld [vmem:[#allocation2 + $0x58] sm:$0xff]
    %v133 = vld [vmem:[#allocation2 + $0x60] sm:$0xff]
    %v134 = vld [vmem:[#allocation2 + $0x68] sm:$0xff]
    %v135 = vld [vmem:[#allocation2 + $0x70] sm:$0xff]
    %v136 = vld [vmem:[#allocation2 + $0x78] sm:$0xff]
    %v137 = vld [vmem:[%s4] sm:$0x1]
    %v139 = vlaneseq
    %v140 = vshrl.u32 %v139, 7
    %v141 = vsub.s32 0, %v140
    %v142 = vrot.slane %v137, %v141
    %144 = vmatprep.subr.mxu0 0.0
    %145 = vmatpush1.msra.mxu0 %v121
    %146 = vmatprep.subr.mxu0 0.0
    %147 = vmatpush1.msra.mxu0 %v122
    %148 = vmatprep.subr.mxu0 0.0
    %149 = vmatpush1.msra.mxu0 %v123
    %150 = vmatprep.subr.mxu0 0.0
    %151 = vmatpush1.msra.mxu0 %v124
    %152 = vmatprep.subr.mxu0 0.0
    %153 = vmatpush1.msra.mxu0 %v125
    %154 = vmatprep.subr.mxu0 0.0
    %155 = vmatpush1.msra.mxu0 %v126
    %156 = vmatprep.subr.mxu0 0.0
    %157 = vmatpush1.msra.mxu0 %v127
    %158 = vmatprep.subr.mxu0 0.0
    %159 = vmatpush1.msra.mxu0 %v128
    %160 = vmatprep.subr.mxu0 0.0
    %161 = vmatpush1.msra.mxu0 %v129
    %162 = vmatprep.subr.mxu0 0.0
    %163 = vmatpush1.msra.mxu0 %v130
    %164 = vmatprep.subr.mxu0 0.0
    %165 = vmatpush1.msra.mxu0 %v131
    %166 = vmatprep.subr.mxu0 0.0
    %167 = vmatpush1.msra.mxu0 %v132
    %168 = vmatprep.subr.mxu0 0.0
    %169 = vmatpush1.msra.mxu0 %v133
    %170 = vmatprep.subr.mxu0 0.0
    %171 = vmatpush1.msra.mxu0 %v134
    %172 = vmatprep.subr.mxu0 0.0
    %173 = vmatpush1.msra.mxu0 %v135
    %174 = vmatprep.subr.mxu0 0.0
    %175 = vmatpush1.msra.mxu0 %v136
    %176 = vmatprep.subr.mxu0 0.0
    %177 = vmatpush1.msra.mxu0 0.0
    %178 = vmatprep.subr.mxu0 0.0
    %179 = vmatpush1.msra.mxu0 0.0
    %180 = vmatprep.subr.mxu0 0.0
    %181 = vmatpush1.msra.mxu0 0.0
    %182 = vmatprep.subr.mxu0 0.0
    %183 = vmatpush1.msra.mxu0 0.0
    %184 = vmatprep.subr.mxu0 0.0
    %185 = vmatpush1.msra.mxu0 0.0
    %186 = vmatprep.subr.mxu0 0.0
    %187 = vmatpush1.msra.mxu0 0.0
    %188 = vmatprep.subr.mxu0 0.0
    %189 = vmatpush1.msra.mxu0 0.0
    %190 = vmatprep.subr.mxu0 0.0
    %191 = vmatpush1.msra.mxu0 0.0
    %192 = vmatprep.subr.mxu0 0.0
    %193 = vmatpush1.msra.mxu0 0.0
    %194 = vmatprep.subr.mxu0 0.0
    %195 = vmatpush1.msra.mxu0 0.0
    %196 = vmatprep.subr.mxu0 0.0
    %197 = vmatpush1.msra.mxu0 0.0
    %198 = vmatprep.subr.mxu0 0.0
    %199 = vmatpush1.msra.mxu0 0.0
    %200 = vmatprep.subr.mxu0 0.0
    %201 = vmatpush1.msra.mxu0 0.0
    %202 = vmatprep.subr.mxu0 0.0
    %203 = vmatpush1.msra.mxu0 0.0
    %204 = vmatprep.subr.mxu0 0.0
    %205 = vmatpush1.msra.mxu0 0.0
    %206 = vmatprep.subr.mxu0 0.0
    %207 = vmatpush1.msra.mxu0 0.0
    %208 = vmatprep.mubr.f32.mxu0 0.0
    %209 = vmatmul.mubr.f32.gmra.mrb[0].mxu0 %v120
    %v210 = vpop.f32.mrb[0].mxu0
    %v211 = vadd.f32 %v142, %v210
    %v212 = vpop.f32.mrb[0].mxu0
    %213 = vdwg.mxu0
    %v214 = vld [vmem:[%s5] sm:$0xff]
    %v215 = vld [vmem:[%s5 + $0x8] sm:$0xff]
    %v216 = vld [vmem:[%s5 + $0x10] sm:$0xff]
    %v219 = vunpack.c.l.s4 1966171168
    %v220 = vunpack.c.0.s8 %v219
    %v221 = vlaneseq
    %v222 = vshrl.u32 %v221, 7
    %v223 = vsub.s32 %v220, %v222
    %v224 = vrot.slane %v211, %v223
    %v225 = vcombine.high %v224, %v224
    %v227 = vunpack.c.l.s4 1966171168
    %v228 = vunpack.c.0.s8 %v227
    %v229 = vlaneseq
    %v230 = vshrl.u32 %v229, 7
    %v231 = vsub.s32 %v228, %v230
    %v232 = vrot.slane %v224, %v231
    %v234 = vunpack.c.l.s4 1966171168
    %v235 = vunpack.c.0.s8 %v234
    %v236 = vlaneseq
    %v237 = vshrl.u32 %v236, 7
    %v238 = vsub.s32 %v235, %v237
    %v239 = vrot.slane %v225, %v238
    %v240 = vlaneseq
    %v241 = vshrl.u32 %v240, 7
    %v242 = vsub.s32 0, %v241
    %v243 = vrot.slane %v232, %v242
    %v244 = vlaneseq
    %v245 = vshrl.u32 %v244, 7
    %v246 = vsub.s32 0, %v245
    %v247 = vrot.slane %v239, %v246
    %v250 = vmul.f32 %v243, %v214
    %v251 = vmul.f32 %v247, %v214
    %v252 = vadd.f32 %v250, 0.0
    %v253 = vadd.f32 %v251, 0.0
    %255 = vrot.lane.b32.xlu0 %v215, 4
    %v256 = vpop.permute.xlu0 %255
    %v258 = vmul.f32 %v243, %v256
    %v259 = vmul.f32 %v247, %v256
    %262 = vrot.lane.b32.xlu0 %v258, 124
    %v263 = vpop.permute.xlu0 %262
    %264 = vrot.lane.b32.xlu0 %v259, 124
    %v265 = vpop.permute.xlu0 %264
    %v268 = vadd.f32 %v252, %v263
    %v269 = vadd.f32 %v253, %v265
    %271 = vrot.lane.b32.xlu0 %v216, 8
    %v272 = vpop.permute.xlu0 %271
    %v274 = vmul.f32 %v243, %v272
    %v275 = vmul.f32 %v247, %v272
    %278 = vrot.lane.b32.xlu0 %v274, 120
    %v279 = vpop.permute.xlu0 %278
    %280 = vrot.lane.b32.xlu0 %v275, 120
    %v281 = vpop.permute.xlu0 %280
    %v284 = vadd.f32 %v268, %v279
    %v285 = vadd.f32 %v269, %v281
    %vm286 = vcmask 31744
    %287 = vst.msk [vmem:[%s6] sm:$0xff] %vm286, %v284
    %288 = vst.msk [vmem:[%s6 + $0x8] sm:$0xff] %vm286, %v285
    // Predicated region
    $region30: #{tpu_custom_call.1} parent=1 // pred_check
      _
    $region31: #{tpu_custom_call.1} parent=1 // pred_check_branch
      %290 = sbr.rel (0) target = $region33
    $region32: #{tpu_custom_call.1} parent=1 // pred_region
      _
    $region33: #{tpu_custom_call.1} parent=1 // pred_fallthru
      _
    // Predicated region
    $region34: #{tpu_custom_call.1} parent=1 // pred_check
      _
    $region35: #{tpu_custom_call.1} parent=1 // pred_check_branch
      %292 = sbr.rel (0) target = $region37
    $region36: #{tpu_custom_call.1} parent=1 // pred_region
      _
    $region37: #{tpu_custom_call.1} parent=1 // pred_fallthru
      _
    %293 = vsyncpa [#allocation3], 1

</llo_original>
